<compile_context>
chip_gen: v5e
topology: v5e:2x2
jax: 0.10.0
libtpu: 0.0.40
codegen_flags: <defaults>
</compile_context>

<pallas_src>
import functools

import numpy as np
import jax
import jax.numpy as jnp
from jax.experimental import pallas as pl
from jax.experimental.pallas import tpu as pltpu


def _round_up(x, m):
    return (x + m - 1) // m * m


# ----------------------------------------------------------------------------
# Pallas kernel: one row-tile of   out = x @ M_interp   (bf16 MXU, f32 accum)
# ----------------------------------------------------------------------------
def _upsample_matmul_kernel(x_ref, m_ref, o_ref):
    a = x_ref[...].astype(jnp.bfloat16)          # cheap VPU cast; MXU bf16 rate
    o_ref[...] = jnp.dot(a, m_ref[...],
                         preferred_element_type=jnp.float32).astype(o_ref.dtype)


# ----------------------------------------------------------------------------
# 1-D bilinear (align_corners=True) interpolation matrix, built once (numpy).
# ----------------------------------------------------------------------------
def _interp_matrix_align_corners(in_size, out_size):
    m = np.zeros((in_size, out_size), np.float64)
    if out_size == 1:
        src = np.zeros((1,), np.float64)
    else:
        src = np.arange(out_size, dtype=np.float64) * (in_size - 1) / (out_size - 1)
    i0 = np.clip(np.floor(src).astype(np.int64), 0, in_size - 1)
    i1 = np.minimum(i0 + 1, in_size - 1)
    frac = src - i0
    cols = np.arange(out_size)
    np.add.at(m, (i0, cols), 1.0 - frac)
    np.add.at(m, (i1, cols), frac)
    # bf16 operand for the MXU (per perf review); accumulation stays f32 in-kernel.
    return jnp.asarray(m.astype(np.float32), jnp.bfloat16)


# ----------------------------------------------------------------------------
# Wrapper: F.interpolate(x, scale_factor=(1, s), mode='bilinear',
#                        align_corners=True) on NCHW input.
# ----------------------------------------------------------------------------
def upsample_bilinear_w(x_nchw, interp_matrix, *, tm_max=512):
    n, c, h, w = x_nchw.shape
    w_in, w_out = interp_matrix.shape
    assert w_in == w, (w_in, w)

    rows = n * c * h
    # Adaptive row tile: amortize per-step overhead, but keep >=2 row tiles
    # when possible so both v7x TensorCores get work on the "parallel" axis.
    if rows >= 2 * tm_max:
        tm = tm_max
    elif rows > 8:
        tm = max(8, _round_up((rows + 1) // 2, 8))
    else:
        tm = _round_up(max(rows, 1), 8)
    rows_p = _round_up(rows, tm)

    a = x_nchw.reshape(rows, w).astype(jnp.float32)   # free view for contiguous NCHW
    if rows_p != rows:
        a = jnp.pad(a, ((0, rows_p - rows), (0, 0)))

    out = pl.pallas_call(
        _upsample_matmul_kernel,
        out_shape=jax.ShapeDtypeStruct((rows_p, w_out), jnp.float32),
        grid_spec=pltpu.PrefetchScalarGridSpec(
            num_scalar_prefetch=0,
            grid=(rows_p // tm,),
            in_specs=[
                pl.BlockSpec((tm, w), lambda i: (i, 0)),        # row tile of x
                pl.BlockSpec((w, w_out), lambda i: (0, 0)),     # resident interp matrix
            ],
            out_specs=pl.BlockSpec((tm, w_out), lambda i: (i, 0)),
        ),
        compiler_params=pltpu.CompilerParams(
            dimension_semantics=("parallel",)),
    )(a, interp_matrix)

    if rows_p != rows:
        out = out[:rows]
    return out.reshape(n, c, h, w_out)


def upsample_forward(x_nchw, scale_factor=2, interp_matrix=None):
    """UpSample.forward (bilinear=True path)."""
    n, c, h, w = x_nchw.shape
    if interp_matrix is None:
        interp_matrix = _interp_matrix_align_corners(w, w * scale_factor)
    return upsample_bilinear_w(x_nchw, interp_matrix)


# ----------------------------------------------------------------------------
# Pure-JAX reference (gather-based) for correctness checking only.
# ----------------------------------------------------------------------------
def _upsample_ref(x, w_out):
    n, c, h, w = x.shape
    if w_out == 1:
        src = jnp.zeros((1,), jnp.float32)
    else:
        src = jnp.arange(w_out, dtype=jnp.float32) * ((w - 1) / (w_out - 1))
    i0 = jnp.clip(jnp.floor(src).astype(jnp.int32), 0, w - 1)
    i1 = jnp.clip(i0 + 1, 0, w - 1)
    f = src - i0.astype(jnp.float32)
    return x[..., i0] * (1.0 - f) + x[..., i1] * f


# ----------------------------------------------------------------------------
if __name__ == "__main__":
    key = jax.random.PRNGKey(0)

    # UpSample defaults: bilinear=True, scale_factor=2 (channel-agnostic path).
    scale_factor = 2
    n, c, h, w = 2, 4, 16, 16
    x = jax.random.normal(key, (n, c, h, w), jnp.float32)

    # Interpolation matrix precomputed once, outside the per-call hot path.
    interp = _interp_matrix_align_corners(w, w * scale_factor)

    fwd = jax.jit(upsample_bilinear_w)
    y = fwd(x, interp)
    jax.block_until_ready(y)

    assert y.shape == (n, c, h, w * scale_factor), y.shape
    assert bool(jnp.all(jnp.isfinite(y)))

    # Numerical check vs. pure-JAX f32 reference (tolerance covers bf16 operands).
    ref = _upsample_ref(x, w * scale_factor)
    max_err = float(jnp.max(jnp.abs(y - ref)))
    assert max_err < 5e-2, max_err

    print("KERNEL_OK")
</pallas_src>

<mosaic_0001>
module attributes {stable_mosaic.version = 11 : i64} {
  func.func @_upsample_matmul_kernel(%arg0: i32, %arg1: memref<64x16xf32, #tpu.memory_space<vmem>>, %arg2: memref<16x32xbf16, #tpu.memory_space<vmem>>, %arg3: memref<64x32xf32, #tpu.memory_space<vmem>>) attributes {dimension_semantics = [#tpu.dimension_semantics<parallel>], iteration_bounds = array<i64: 2>, scalar_prefetch = 0 : i64, scratch_operands = 0 : i64, tpu.core_type = #tpu.core_type<tc>, window_params = [{transform_indices = @transform_0, window_bounds = array<i64: 64, 16>}, {pipeline_mode = #tpu.pipeline_mode<synchronous>, transform_indices = @transform_1, window_bounds = array<i64: 16, 32>}, {transform_indices = @transform_2, window_bounds = array<i64: 64, 32>}]} {
    %c0 = arith.constant 0 : index
    %c0_0 = arith.constant 0 : index
    %0 = vector.load %arg1[%c0, %c0_0] : memref<64x16xf32, #tpu.memory_space<vmem>>, vector<64x16xf32>
    %1 = arith.truncf %0 : vector<64x16xf32> to vector<64x16xbf16>
    %c0_1 = arith.constant 0 : index
    %c0_2 = arith.constant 0 : index
    %2 = vector.load %arg2[%c0_1, %c0_2] : memref<16x32xbf16, #tpu.memory_space<vmem>>, vector<16x32xbf16>
    %cst = arith.constant dense<0.000000e+00> : vector<64x32xf32>
    %3 = tpu.matmul %1, %2, %cst {dimension_numbers = #tpu.dot_dimension_numbers<[1], [0], [0], [1], [0, 0, 1, 1], [], []>} : vector<64x16xbf16>, vector<16x32xbf16>, vector<64x32xf32> -> vector<64x32xf32>
    %c0_3 = arith.constant 0 : index
    %c0_4 = arith.constant 0 : index
    %4 = vector.load %arg3[%c0_3, %c0_4] : memref<64x32xf32, #tpu.memory_space<vmem>>, vector<64x32xf32>
    tpu.vector_store %arg3[%c0_3, %c0_4], %3 {strides = array<i32>} : memref<64x32xf32, #tpu.memory_space<vmem>>, vector<64x32xf32>,
    return
  }
  func.func @transform_0(%arg0: i32) -> (i32, i32) {
    %c0_i32 = arith.constant 0 : i32
    %c0_i32_0 = arith.constant 0 : i32
    return %arg0, %c0_i32 : i32, i32
  }
  func.func @transform_1(%arg0: i32) -> (i32, i32) {
    %c0_i32 = arith.constant 0 : i32
    %c0_i32_0 = arith.constant 0 : i32
    %c0_i32_1 = arith.constant 0 : i32
    return %c0_i32, %c0_i32_0 : i32, i32
  }
  func.func @transform_2(%arg0: i32) -> (i32, i32) {
    %c0_i32 = arith.constant 0 : i32
    %c0_i32_0 = arith.constant 0 : i32
    return %arg0, %c0_i32 : i32, i32
  }
}

</mosaic_0001>

<llo_original>
// kernel: upsample_bilinear_w.1
$region0: #{upsample_bilinear_w.1}
  #allocation0 [shape = 'u32[]', space=smem, size = 0x4, offset = 0x4, fixed_abs, tag = 'smem constant byte address 0x4 - core index']
  #allocation1 [shape = 'u32[72,128]{1,0:T(1,128)}', space=vmem, size = 0x9000, scoped, tag = 'internal scratch']
  %s0 = inlined_call_operand.hbm [shape: f32[128,16], index: 0, kind: input, shape index: {}]
  %s1 = inlined_call_operand.hbm [shape: bf16[16,32], index: 1, kind: input, shape index: {}]
  %s2 = inlined_call_operand.hbm [shape: f32[128,32], index: 2, kind: output, shape index: {}]
  %s3 = sld [smem:[#allocation0]]
  $region49: #{upsample_bilinear_w.1} parent=0
    _
  %s5 = ssub.s32 1, %s3
  %s6 = scalar_select 0, %s5, %s3
  $region1: #{upsample_bilinear_w.1} parent=0
    #allocation2 [shape = 'u8[65536]{0}', space=vmem, size = 0x10000, scoped, tag = 'input window, operand 0']
    #allocation3 [shape = 's32[2]{0}', space=sflag, size = 0x8, scoped, tag = 'scoped memory for upsample_bilinear_w.1']
    #allocation4 [shape = 's32[2]{0}', space=sflag, size = 0x8, scoped, tag = 'scoped memory for upsample_bilinear_w.1']
    #allocation5 [shape = 'u8[4096]{0}', space=vmem, size = 0x1000, scoped, tag = 'input window, operand 1, single buffered']
    #allocation6 [shape = 's32[1]{0}', space=sflag, size = 0x4, scoped, tag = 'scoped memory for upsample_bilinear_w.1']
    #allocation7 [shape = 'u8[65536]{0}', space=vmem, size = 0x10000, scoped, tag = 'output window, operand 0']
    %7 = vsyncpa [#allocation3], 0
    %s8 = scalar_lea.sflag [#allocation3], 1
    %9 = vsyncpa %s8, 0
    %10 = vsyncpa [#allocation6], 0
    %11 = vsyncpa [#allocation4], 0
    %s12 = scalar_lea.sflag [#allocation4], 1
    %13 = vsyncpa %s12, 0
    loop: start=0, step=1, limit=4
    $region2: #{upsample_bilinear_w.1} parent=1 // loop_pre_header
      _
    $region3: #{upsample_bilinear_w.1} parent=1 // loop_header
      %s15 = sphi 0, %s19
      %p16 = scmp.ge.s32.totalorder %s15, 4
      %s25 = sphi 0, %s27
      %s28 = sphi 0, %s25
      %s29 = sphi 0, %s28
      %s45 = sphi 0, %s29
      %s49 = sphi 0, %s49
      %s51 = sphi 0, %s49
      %s52 = sphi 0, %s51
      %s66 = sphi 0, %s52
      %s72 = sphi 0, %s74
      %s75 = sphi 0, %s72
      %s76 = sphi 0, %s75
      %s92 = sphi 0, %s76
    $region4: #{upsample_bilinear_w.1} parent=1 // loop_header_branch
      %18 = sbr.rel (%p16) target = $region8
    $region5: #{upsample_bilinear_w.1} parent=1 // loop_body
      %s20 = ssub.s32 %s15, 1
      %s21 = ssub.s32 %s15, 2
      %s22 = sadd.s32 %s15, 1
      %s23 = ssub.s32 %s15, %s22
      %p24 = scmp.eq.s32.totalorder %s23, 0
      %s26 = sadd.s32 %s25, 1
      %s27 = scalar_select %p24, %s25, %s26
      %p30 = pneg %p24
      %p31 = scmp.eq.s32.totalorder %s15, 1
      %p32 = por %p30, %p31
      %p33 = scmp.ne.s32.totalorder %s25, %s28
      %p34 = scmp.eq.s32.totalorder %s15, 0
      %p35 = por %p33, %p34
      %p36 = scmp.ne.s32.totalorder %s25, %s28
      %p37 = scmp.eq.s32.totalorder %s20, 1
      %p38 = por %p36, %p37
      %p39 = scmp.ne.s32.totalorder %s28, %s29
      %p40 = scmp.eq.s32.totalorder %s20, 0
      %p41 = por %p39, %p40
      %p42 = scmp.ne.s32.totalorder %s28, %s29
      %p43 = scmp.eq.s32.totalorder %s21, 1
      %p44 = por %p42, %p43
      %p46 = scmp.ne.s32.totalorder %s29, %s45
      %p47 = scmp.eq.s32.totalorder %s21, 0
      %p48 = por %p46, %p47
      %s50 = sadd.s32 %s49, 1
      %p53 = scmp.eq.s32.totalorder %s15, 1
      %p54 = scmp.ne.s32.totalorder %s49, %s51
      %p55 = scmp.eq.s32.totalorder %s15, 0
      %p56 = por %p54, %p55
      %p57 = scmp.ne.s32.totalorder %s49, %s51
      %p58 = scmp.eq.s32.totalorder %s20, 1
      %p59 = por %p57, %p58
      %p60 = scmp.ne.s32.totalorder %s51, %s52
      %p61 = scmp.eq.s32.totalorder %s20, 0
      %p62 = por %p60, %p61
      %p63 = scmp.ne.s32.totalorder %s51, %s52
      %p64 = scmp.eq.s32.totalorder %s21, 1
      %p65 = por %p63, %p64
      %p67 = scmp.ne.s32.totalorder %s52, %s66
      %p68 = scmp.eq.s32.totalorder %s21, 0
      %p69 = por %p67, %p68
      %s70 = ssub.s32 %s15, %s22
      %p71 = scmp.eq.s32.totalorder %s70, 0
      %s73 = sadd.s32 %s72, 1
      %s74 = scalar_select %p71, %s72, %s73
      %p77 = pneg %p71
      %p78 = scmp.eq.s32.totalorder %s15, 1
      %p79 = por %p77, %p78
      %p80 = scmp.ne.s32.totalorder %s72, %s75
      %p81 = scmp.eq.s32.totalorder %s15, 0
      %p82 = por %p80, %p81
      %p83 = scmp.ne.s32.totalorder %s72, %s75
      %p84 = scmp.eq.s32.totalorder %s20, 1
      %p85 = por %p83, %p84
      %p86 = scmp.ne.s32.totalorder %s75, %s76
      %p87 = scmp.eq.s32.totalorder %s20, 0
      %p88 = por %p86, %p87
      %p89 = scmp.ne.s32.totalorder %s75, %s76
      %p90 = scmp.eq.s32.totalorder %s21, 1
      %p91 = por %p89, %p90
      %p93 = scmp.ne.s32.totalorder %s76, %s92
      %p94 = scmp.eq.s32.totalorder %s21, 0
      %p95 = por %p93, %p94
      %p96 = scmp.le.s32.totalorder 1, %s15
      %p97 = scmp.lt.s32.totalorder %s15, 3
      %p98 = pnand %p96, %p97
      %p99 = pneg %p98
      // Predicated region
      $region9: #{upsample_bilinear_w.1} parent=5 // pred_check
        _
      $region10: #{upsample_bilinear_w.1} parent=5 // pred_check_branch
        %101 = sbr.rel (%p98) target = $region12
      $region11: #{upsample_bilinear_w.1} parent=5 // pred_region
        %s102 = ssub.s32 %s15, 1
        // Predicated region
        $region13: #{upsample_bilinear_w.1} parent=11 // pred_check
          %p103 = pneg %p62
        $region14: #{upsample_bilinear_w.1} parent=11 // pred_check_branch
          %105 = sbr.rel (%p103) target = $region16
        $region15: #{upsample_bilinear_w.1} parent=11 // pred_region
          %107 = vsyncadd [#allocation6], 0
          %s108 = sshll.u32 %s1, 4
          %s109 = int_to_ptr.hbm [resolvable:$true] %s108
          %s110 = sshll.u32 [#allocation5], 4
          %s111 = int_to_ptr.vmem [resolvable:$true] %s110
          %116 = dma.hbm_to_vmem [thread:$0]  %s109, 128, %s111, [#allocation6], 64, 64, 4
        $region16: #{upsample_bilinear_w.1} parent=11 // pred_fallthru
          _
      $region12: #{upsample_bilinear_w.1} parent=5 // pred_fallthru
        _
      %p117 = scmp.lt.s32.totalorder %s15, 2
      // Predicated region
      $region17: #{upsample_bilinear_w.1} parent=5 // pred_check
        %p118 = pneg %p117
      $region18: #{upsample_bilinear_w.1} parent=5 // pred_check_branch
        %120 = sbr.rel (%p118) target = $region20
      $region19: #{upsample_bilinear_w.1} parent=5 // pred_region
        // Predicated region
        $region21: #{upsample_bilinear_w.1} parent=19 // pred_check
          %p121 = pneg %p35
        $region22: #{upsample_bilinear_w.1} parent=19 // pred_check_branch
          %123 = sbr.rel (%p121) target = $region24
        $region23: #{upsample_bilinear_w.1} parent=19 // pred_region
          %s124 = sand.u32 %s25, 1
          %s125 = scalar_lea.sflag [#allocation3], %s124
          %s126 = sand.u32 %s25, 1
          %s127 = smul.addr %s126, 64
          %s128 = scalar_lea.vmem [#allocation2], %s127
          %s129 = smul.u32 8, %s15
          %131 = vsyncadd %s125, 0
          %s132 = smul.addr %s129, 8
          %s133 = scalar_lea.hbm %s0, %s132
          %s134 = sshll.u32 %s133, 4
          %s135 = int_to_ptr.hbm [resolvable:$true] %s134
          %s136 = sshll.u32 %s128, 4
          %s137 = int_to_ptr.vmem [resolvable:$true] %s136
          %142 = dma.hbm_to_vmem [thread:$0]  %s135, 1024, %s137, %s125, 128, 128, 8
        $region24: #{upsample_bilinear_w.1} parent=19 // pred_fallthru
          _
      $region20: #{upsample_bilinear_w.1} parent=5 // pred_fallthru
        _
      %p143 = scmp.le.s32.totalorder 1, %s15
      %p144 = scmp.lt.s32.totalorder %s15, 3
      %p145 = pnand %p143, %p144
      %p146 = pneg %p145
      // Predicated region
      $region25: #{upsample_bilinear_w.1} parent=5 // pred_check
        _
      $region26: #{upsample_bilinear_w.1} parent=5 // pred_check_branch
        %148 = sbr.rel (%p145) target = $region28
      $region27: #{upsample_bilinear_w.1} parent=5 // pred_region
        %s149 = ssub.s32 %s15, 1
        %s150 = sand.u32 %s28, 1
        %s151 = scalar_lea.sflag [#allocation3], %s150
        %s152 = sand.u32 %s28, 1
        %s153 = smul.addr %s152, 64
        %s154 = scalar_lea.vmem [#allocation2], %s153
        // Predicated region
        $region29: #{upsample_bilinear_w.1} parent=27 // pred_check
          %p155 = pneg %p41
        $region30: #{upsample_bilinear_w.1} parent=27 // pred_check_branch
          %157 = sbr.rel (%p155) target = $region32
        $region31: #{upsample_bilinear_w.1} parent=27 // pred_region
          %159 = dma.done %s151, 1024
        $region32: #{upsample_bilinear_w.1} parent=27 // pred_fallthru
          _
        // Predicated region
        $region33: #{upsample_bilinear_w.1} parent=27 // pred_check
          %p160 = pneg %p62
        $region34: #{upsample_bilinear_w.1} parent=27 // pred_check_branch
          %162 = sbr.rel (%p160) target = $region36
        $region35: #{upsample_bilinear_w.1} parent=27 // pred_region
          %164 = dma.done [#allocation6], 128
        $region36: #{upsample_bilinear_w.1} parent=27 // pred_fallthru
          _
        %s165 = sand.u32 %s28, 1
        %s166 = scalar_lea.sflag [#allocation3], %s165
        %s167 = sand.u32 %s28, 1
        %s168 = smul.addr %s167, 64
        %s169 = scalar_lea.vmem [#allocation2], %s168
        %p170 = pneg %p41
        %p171 = pneg %p38
        %p172 = pneg %p62
        %p173 = pneg %p59
        %p174 = pneg %p88
        %p175 = pneg %p85
        %s176 = sand.u32 %s75, 1
        %s177 = scalar_lea.sflag [#allocation4], %s176
        %s178 = sand.u32 %s75, 1
        %s179 = smul.addr %s178, 64
        %s180 = scalar_lea.vmem [#allocation7], %s179
        %s181 = smul.u32 8, %s20
        %s182 = smul.u32 8, %s20
        %v184 = vld [vmem:[%s154] sm:$0xff]
        %v185 = vld [vmem:[%s154 + $0x8] sm:$0xff]
        %v186 = vld [vmem:[%s154 + $0x10] sm:$0xff]
        %v187 = vld [vmem:[%s154 + $0x18] sm:$0xff]
        %v188 = vld [vmem:[%s154 + $0x20] sm:$0xff]
        %v189 = vld [vmem:[%s154 + $0x28] sm:$0xff]
        %v190 = vld [vmem:[%s154 + $0x30] sm:$0xff]
        %v191 = vld [vmem:[%s154 + $0x38] sm:$0xff]
        %v192 = vpack.c.bf16 %v185, %v184
        %v193 = vpack.c.bf16 %v187, %v186
        %v194 = vpack.c.bf16 %v189, %v188
        %v195 = vpack.c.bf16 %v191, %v190
        %v196 = vld [vmem:[#allocation5] sm:$0xf]
        %v197 = vld [vmem:[#allocation5 + $0x4] sm:$0xf]
        %v200 = vunpack.c.l.b16 %v196
        %v201 = vunpack.c.l.b16 %v197
        %v202 = vpack.c.b16 %v201, %v200
        %vm204 = vcmask 130048
        %v206 = vsel %vm204, %v192, 0
        %v209 = vsel %vm204, %v193, 0
        %v212 = vsel %vm204, %v194, 0
        %v215 = vsel %vm204, %v195, 0
        %217 = vmatpush.bf16.msra.mxu0 0
        %218 = vmatpush.bf16.msra.mxu0 0
        %219 = vmatpush.bf16.msra.mxu0 0
        %220 = vmatpush.bf16.msra.mxu0 0
        %221 = vmatpush.bf16.msra.mxu0 0
        %222 = vmatpush.bf16.msra.mxu0 0
        %223 = vmatpush.bf16.msra.mxu0 0
        %224 = vmatpush.bf16.msra.mxu0 %v202
        %225 = vmatmul.bf16.gmra.mxu0 %v206
        %v226 = vpop.f32.mrf.mxu0
        %v227 = vadd.f32 0.0, %v226
        %v228 = vpop.f32.mrf.mxu0
        %v229 = vadd.f32 0.0, %v228
        %230 = vmatmul.bf16.gmra.mxu0 %v209
        %v231 = vpop.f32.mrf.mxu0
        %v232 = vadd.f32 0.0, %v231
        %v233 = vpop.f32.mrf.mxu0
        %v234 = vadd.f32 0.0, %v233
        %235 = vmatmul.bf16.gmra.mxu0 %v212
        %v236 = vpop.f32.mrf.mxu0
        %v237 = vadd.f32 0.0, %v236
        %v238 = vpop.f32.mrf.mxu0
        %v239 = vadd.f32 0.0, %v238
        %240 = vmatmul.bf16.gmra.mxu0 %v215
        %v241 = vpop.f32.mrf.mxu0
        %v242 = vadd.f32 0.0, %v241
        %v243 = vpop.f32.mrf.mxu0
        %v244 = vadd.f32 0.0, %v243
        %245 = vdwg.mxu0
        %vm246 = vcmask 261120
        %247 = vst.msk [vmem:[%s180] sm:$0xff] %vm246, %v227
        %248 = vst.msk [vmem:[%s180 + $0x8] sm:$0xff] %vm246, %v229
        %249 = vst.msk [vmem:[%s180 + $0x10] sm:$0xff] %vm246, %v232
        %250 = vst.msk [vmem:[%s180 + $0x18] sm:$0xff] %vm246, %v234
        %251 = vst.msk [vmem:[%s180 + $0x20] sm:$0xff] %vm246, %v237
        %252 = vst.msk [vmem:[%s180 + $0x28] sm:$0xff] %vm246, %v239
        %253 = vst.msk [vmem:[%s180 + $0x30] sm:$0xff] %vm246, %v242
        %254 = vst.msk [vmem:[%s180 + $0x38] sm:$0xff] %vm246, %v244
        %s255 = sand.u32 %s75, 1
        %s256 = scalar_lea.sflag [#allocation4], %s255
        %s257 = sand.u32 %s75, 1
        %s258 = smul.addr %s257, 64
        %s259 = scalar_lea.vmem [#allocation7], %s258
        // Predicated region
        $region37: #{upsample_bilinear_w.1} parent=27 // pred_check
          %p260 = pneg %p85
        $region38: #{upsample_bilinear_w.1} parent=27 // pred_check_branch
          %262 = sbr.rel (%p260) target = $region40
        $region39: #{upsample_bilinear_w.1} parent=27 // pred_region
          %s263 = smul.u32 8, %s20
          %265 = vsyncadd %s256, 0
          %s266 = smul.addr %s263, 8
          %s267 = scalar_lea.hbm %s2, %s266
          %s268 = sshll.u32 %s259, 4
          %s269 = int_to_ptr.vmem [resolvable:$true] %s268
          %s270 = sshll.u32 %s267, 4
          %s271 = int_to_ptr.hbm [resolvable:$true] %s270
          %276 = dma.vmem_to_hbm [thread:$0]  %s269, 1024, %s271, %s256, 128, 128, 8
        $region40: #{upsample_bilinear_w.1} parent=27 // pred_fallthru
          _
      $region28: #{upsample_bilinear_w.1} parent=5 // pred_fallthru
        _
      %p277 = scmp.le.s32.totalorder 2, %s15
      // Predicated region
      $region41: #{upsample_bilinear_w.1} parent=5 // pred_check
        %p278 = pneg %p277
      $region42: #{upsample_bilinear_w.1} parent=5 // pred_check_branch
        %280 = sbr.rel (%p278) target = $region44
      $region43: #{upsample_bilinear_w.1} parent=5 // pred_region
        %s281 = ssub.s32 %s15, 2
        // Predicated region
        $region45: #{upsample_bilinear_w.1} parent=43 // pred_check
          %p282 = pneg %p91
        $region46: #{upsample_bilinear_w.1} parent=43 // pred_check_branch
          %284 = sbr.rel (%p282) target = $region48
        $region47: #{upsample_bilinear_w.1} parent=43 // pred_region
          %s285 = sand.u32 %s76, 1
          %s286 = scalar_lea.sflag [#allocation4], %s285
          %s287 = sand.u32 %s76, 1
          %s288 = smul.addr %s287, 64
          %s289 = scalar_lea.vmem [#allocation7], %s288
          %291 = dma.done %s286, 1024
        $region48: #{upsample_bilinear_w.1} parent=43 // pred_fallthru
          _
      $region44: #{upsample_bilinear_w.1} parent=5 // pred_fallthru
        _
    $region6: #{upsample_bilinear_w.1} parent=1 // loop_footer
      %s19 = sadd.s32 1, %s15
    $region7: #{upsample_bilinear_w.1} parent=1 // loop_footer_branch
      %14 = sbr.rel target = $region3
    $region8: #{upsample_bilinear_w.1} parent=1 // loop_exit
      _
    %292 = vsyncpa [#allocation3], 1
    %s293 = scalar_lea.sflag [#allocation3], 1
    %294 = vsyncpa %s293, 1
    %295 = vsyncpa [#allocation6], 1
    %296 = vsyncpa [#allocation4], 1
    %s297 = scalar_lea.sflag [#allocation4], 1
    %298 = vsyncpa %s297, 1

</llo_original>
